<compile_context>
chip_gen: v7x
topology: tpu7x:2x2x1
jax: 0.10.0
libtpu: 0.0.40
codegen_flags: <defaults>
</compile_context>

<pallas_src>
import math

import jax
import jax.numpy as jnp
from jax.experimental import pallas as pl
from jax.experimental.pallas import tpu as pltpu


def _round_up(v, m):
    return ((v + m - 1) // m) * m


# ----------------------------------------------------------------------------- kernel
def _fmpe_kernel(theta_ref, x_ref, t_ref, freqs_ref,
                 w1a_ref, w1b_ref, w1c_ref, w1d_ref, b1_ref,
                 w2_ref, b2_ref, w3_ref, b3_ref, out_ref):
    """Fused time-embedding + 3-layer MLP for one (TM, .) batch tile."""
    # ---- time embedding: (TM,1) * (1,F) -> (TM,F); cos/sin go to the EUP (free slot)
    ang = t_ref[...] * freqs_ref[...]
    cos_e = jnp.cos(ang).astype(jnp.bfloat16)
    sin_e = jnp.sin(ang).astype(jnp.bfloat16)

    th = theta_ref[...].astype(jnp.bfloat16)
    xx = x_ref[...].astype(jnp.bfloat16)

    # ---- layer 1: feat @ W1 + b1 expressed as four partial matmuls (no concat, no feat)
    h = jnp.dot(th, w1a_ref[...], preferred_element_type=jnp.float32)
    h = h + jnp.dot(xx, w1b_ref[...], preferred_element_type=jnp.float32)
    h = h + jnp.dot(cos_e, w1c_ref[...], preferred_element_type=jnp.float32)
    h = h + jnp.dot(sin_e, w1d_ref[...], preferred_element_type=jnp.float32)
    h = jnp.maximum(h + b1_ref[...], 0.0)                                   # f32 VPU

    # ---- layer 2
    h = jnp.dot(h.astype(jnp.bfloat16), w2_ref[...],
                preferred_element_type=jnp.float32)
    h = jnp.maximum(h + b2_ref[...], 0.0)

    # ---- layer 3: MXU matmul against lane-padded W3, then store only the real D
    #      columns (keeps HBM writeback at the true (TM, D) volume).
    o = jnp.dot(h.astype(jnp.bfloat16), w3_ref[...],
                preferred_element_type=jnp.float32)
    d = out_ref.shape[-1]
    out_ref[...] = (o[:, :d] + b3_ref[...]).astype(out_ref.dtype)


# ----------------------------------------------------------------------------- wrapper
def fmpe_forward(theta, x, t, params, freqs, *, block_m=512):
    """JAX/Pallas equivalent of FMPE.forward.

    theta: (*, D), x: (*, L), t: (*,)  ->  (*, D)
    """
    w1, b1, w2, b2, w3, b3 = params
    D = w3.shape[-1]
    L = x.shape[-1]
    F = freqs.shape[-1]
    H = w1.shape[-1]
    assert w1.shape[0] == D + L + 2 * F

    # --- broadcast batch dims (cheap glue, stays in XLA)
    batch = jnp.broadcast_shapes(theta.shape[:-1], x.shape[:-1], t.shape)
    theta_b = jnp.broadcast_to(theta, batch + (D,)).astype(jnp.float32)
    x_b = jnp.broadcast_to(x, batch + (L,)).astype(jnp.float32)
    t_b = jnp.broadcast_to(t, batch).astype(jnp.float32)

    B = int(math.prod(batch)) if batch else 1
    theta2d = theta_b.reshape(B, D)
    x2d = x_b.reshape(B, L)
    t2d = t_b.reshape(B, 1)
    freqs2d = freqs.reshape(1, F).astype(jnp.float32)

    # --- batch tiling: large tiles amortize per-step overhead, grid gives pipelining
    TM = block_m if B >= block_m else _round_up(max(B, 1), 8)
    B_pad = _round_up(B, TM)
    if B_pad != B:
        pad = B_pad - B
        theta2d = jnp.pad(theta2d, ((0, pad), (0, 0)))
        x2d = jnp.pad(x2d, ((0, pad), (0, 0)))
        t2d = jnp.pad(t2d, ((0, pad), (0, 0)))
    nb = B_pad // TM

    # --- weight prep: split W1 by input block (theta | x | cos | sin), bf16 matmul
    #     operands, f32 biases.  W3 is zero-padded to 128 lanes for a clean MXU tile
    #     (the kernel slices the result back to D before the store).
    bf = jnp.bfloat16
    w1a = w1[:D].astype(bf)
    w1b = w1[D:D + L].astype(bf)
    w1c = w1[D + L:D + L + F].astype(bf)
    w1d = w1[D + L + F:].astype(bf)
    b1f = b1.reshape(1, H).astype(jnp.float32)
    w2b = w2.astype(bf)
    b2f = b2.reshape(1, H).astype(jnp.float32)
    D_pad = _round_up(D, 128)
    w3p = jnp.zeros((H, D_pad), bf).at[:, :D].set(w3.astype(bf))
    b3f = b3.reshape(1, D).astype(jnp.float32)

    fin = D + L + 2 * F
    cost = pl.CostEstimate(
        flops=2 * B_pad * (fin * H + H * H + H * D_pad),
        transcendentals=2 * B_pad * F,
        bytes_accessed=4 * B_pad * (D + L + 1 + D)
        + 2 * (fin * H + H * H + H * D_pad) + 4 * (2 * H + D),
    )

    row_spec = lambda c: pl.BlockSpec((TM, c), lambda i: (i, 0))
    const_spec = lambda r, c: pl.BlockSpec((r, c), lambda i: (0, 0))

    out2d = pl.pallas_call(
        _fmpe_kernel,
        out_shape=jax.ShapeDtypeStruct((B_pad, D), jnp.float32),
        grid=(nb,),
        in_specs=[
            row_spec(D), row_spec(L), row_spec(1),           # theta, x, t tiles
            const_spec(1, F),                                # freqs (resident)
            const_spec(D, H), const_spec(L, H),              # W1 splits (resident)
            const_spec(F, H), const_spec(F, H),
            const_spec(1, H),                                # b1
            const_spec(H, H), const_spec(1, H),              # W2, b2
            const_spec(H, D_pad), const_spec(1, D),          # W3 (lane-padded), b3
        ],
        out_specs=pl.BlockSpec((TM, D), lambda i: (i, 0)),
        compiler_params=pltpu.CompilerParams(
            dimension_semantics=("parallel",)),
        cost_estimate=cost,
    )(theta2d, x2d, t2d, freqs2d,
      w1a, w1b, w1c, w1d, b1f, w2b, b2f, w3p, b3f)

    return out2d[:B, :].reshape(batch + (D,))


# ----------------------------------------------------------------------------- params
def init_fmpe_params(key, theta_dim, x_dim, freqs=3, hidden=64):
    """Deterministic synthetic init matching lampe's default MLP(hidden=(64, 64))."""
    in_dim = theta_dim + x_dim + 2 * freqs
    k1, k2, k3 = jax.random.split(key, 3)

    def linear(k, fan_in, fan_out):
        bound = 1.0 / math.sqrt(fan_in)
        kw, kb = jax.random.split(k)
        w = jax.random.uniform(kw, (fan_in, fan_out), jnp.float32, -bound, bound)
        b = jax.random.uniform(kb, (1, fan_out), jnp.float32, -bound, bound)
        return w, b

    w1, b1 = linear(k1, in_dim, hidden)
    w2, b2 = linear(k2, hidden, hidden)
    w3, b3 = linear(k3, hidden, theta_dim)
    return (w1, b1, w2, b2, w3, b3)


# ----------------------------------------------------------------------------- main
if __name__ == "__main__":
    THETA_DIM = 4    # D
    X_DIM = 8        # L
    FREQS = 3        # F  -> time embedding of size 2F = 6
    BATCH = 8
    HIDDEN = 64

    key = jax.random.PRNGKey(0)
    kp, kth, kx, kt = jax.random.split(key, 4)

    params = init_fmpe_params(kp, THETA_DIM, X_DIM, FREQS, HIDDEN)
    freqs = jnp.arange(1, FREQS + 1, dtype=jnp.float32) * jnp.pi            # buffer 'freqs'

    theta = jax.random.normal(kth, (BATCH, THETA_DIM), jnp.float32)
    x = jax.random.normal(kx, (BATCH, X_DIM), jnp.float32)
    t = jax.random.uniform(kt, (BATCH,), jnp.float32)

    out = fmpe_forward(theta, x, t, params, freqs)
    out = jax.block_until_ready(out)
    assert out.shape == (BATCH, THETA_DIM), out.shape

    w1, b1, w2, b2, w3, b3 = params
    D, L, F = THETA_DIM, X_DIM, FREQS
    bf = jnp.bfloat16

    # reference mirroring the kernel's bf16-matmul / f32-accumulate path (tight check)
    ang = t[:, None] * freqs[None, :]
    cos_e = jnp.cos(ang).astype(bf)
    sin_e = jnp.sin(ang).astype(bf)
    h = jnp.dot(theta.astype(bf), w1[:D].astype(bf), preferred_element_type=jnp.float32)
    h = h + jnp.dot(x.astype(bf), w1[D:D + L].astype(bf), preferred_element_type=jnp.float32)
    h = h + jnp.dot(cos_e, w1[D + L:D + L + F].astype(bf), preferred_element_type=jnp.float32)
    h = h + jnp.dot(sin_e, w1[D + L + F:].astype(bf), preferred_element_type=jnp.float32)
    h = jnp.maximum(h + b1, 0.0)
    h = jnp.maximum(jnp.dot(h.astype(bf), w2.astype(bf),
                            preferred_element_type=jnp.float32) + b2, 0.0)
    ref_bf16 = jnp.dot(h.astype(bf), w3.astype(bf),
                       preferred_element_type=jnp.float32) + b3
    assert jnp.allclose(out, ref_bf16, atol=2e-3, rtol=2e-3), float(jnp.max(jnp.abs(out - ref_bf16)))

    # full-f32 reference (module semantics) — loose tolerance because matmul inputs are bf16
    temb = jnp.concatenate([jnp.cos(ang), jnp.sin(ang)], axis=-1)
    feat = jnp.concatenate([theta, x, temb], axis=-1)
    ref = jnp.maximum(feat @ w1 + b1, 0.0)
    ref = jnp.maximum(ref @ w2 + b2, 0.0)
    ref = ref @ w3 + b3
    assert jnp.allclose(out, ref, atol=5e-2, rtol=5e-2)

    print("KERNEL_OK")
</pallas_src>

<mosaic_0001>
module attributes {stable_mosaic.version = 11 : i64} {
  func.func @_fmpe_kernel(%arg0: i32, %arg1: memref<8x4xf32, #tpu.memory_space<vmem>>, %arg2: memref<8x8xf32, #tpu.memory_space<vmem>>, %arg3: memref<8x1xf32, #tpu.memory_space<vmem>>, %arg4: memref<1x3xf32, #tpu.memory_space<vmem>>, %arg5: memref<4x64xbf16, #tpu.memory_space<vmem>>, %arg6: memref<8x64xbf16, #tpu.memory_space<vmem>>, %arg7: memref<3x64xbf16, #tpu.memory_space<vmem>>, %arg8: memref<3x64xbf16, #tpu.memory_space<vmem>>, %arg9: memref<1x64xf32, #tpu.memory_space<vmem>>, %arg10: memref<64x64xbf16, #tpu.memory_space<vmem>>, %arg11: memref<1x64xf32, #tpu.memory_space<vmem>>, %arg12: memref<64x128xbf16, #tpu.memory_space<vmem>>, %arg13: memref<1x4xf32, #tpu.memory_space<vmem>>, %arg14: memref<8x4xf32, #tpu.memory_space<vmem>>) attributes {dimension_semantics = [#tpu.dimension_semantics<parallel>], iteration_bounds = array<i64: 1>, scalar_prefetch = 0 : i64, scratch_operands = 0 : i64, tpu.core_type = #tpu.core_type<tc>, window_params = [{transform_indices = @transform_0, window_bounds = array<i64: 8, 4>}, {transform_indices = @transform_1, window_bounds = array<i64: 8, 8>}, {transform_indices = @transform_2, window_bounds = array<i64: 8, 1>}, {pipeline_mode = #tpu.pipeline_mode<synchronous>, transform_indices = @transform_3, window_bounds = array<i64: 1, 3>}, {pipeline_mode = #tpu.pipeline_mode<synchronous>, transform_indices = @transform_4, window_bounds = array<i64: 4, 64>}, {pipeline_mode = #tpu.pipeline_mode<synchronous>, transform_indices = @transform_5, window_bounds = array<i64: 8, 64>}, {pipeline_mode = #tpu.pipeline_mode<synchronous>, transform_indices = @transform_6, window_bounds = array<i64: 3, 64>}, {pipeline_mode = #tpu.pipeline_mode<synchronous>, transform_indices = @transform_7, window_bounds = array<i64: 3, 64>}, {pipeline_mode = #tpu.pipeline_mode<synchronous>, transform_indices = @transform_8, window_bounds = array<i64: 1, 64>}, {pipeline_mode = #tpu.pipeline_mode<synchronous>, transform_indices = @transform_9, window_bounds = array<i64: 64, 64>}, {pipeline_mode = #tpu.pipeline_mode<synchronous>, transform_indices = @transform_10, window_bounds = array<i64: 1, 64>}, {pipeline_mode = #tpu.pipeline_mode<synchronous>, transform_indices = @transform_11, window_bounds = array<i64: 64, 128>}, {pipeline_mode = #tpu.pipeline_mode<synchronous>, transform_indices = @transform_12, window_bounds = array<i64: 1, 4>}, {transform_indices = @transform_13, window_bounds = array<i64: 8, 4>}]} {
    %c0 = arith.constant 0 : index
    %c0_0 = arith.constant 0 : index
    %0 = vector.load %arg3[%c0, %c0_0] : memref<8x1xf32, #tpu.memory_space<vmem>>, vector<8x1xf32>
    %c0_1 = arith.constant 0 : index
    %c0_2 = arith.constant 0 : index
    %1 = vector.load %arg4[%c0_1, %c0_2] : memref<1x3xf32, #tpu.memory_space<vmem>>, vector<1x3xf32>
    %2 = vector.broadcast %0 : vector<8x1xf32> to vector<8x3xf32>
    %3 = vector.broadcast %1 : vector<1x3xf32> to vector<8x3xf32>
    %4 = arith.mulf %2, %3 : vector<8x3xf32>
    %5 = math.cos %4 : vector<8x3xf32>
    %6 = arith.truncf %5 : vector<8x3xf32> to vector<8x3xbf16>
    %7 = math.sin %4 : vector<8x3xf32>
    %8 = arith.truncf %7 : vector<8x3xf32> to vector<8x3xbf16>
    %c0_3 = arith.constant 0 : index
    %c0_4 = arith.constant 0 : index
    %9 = vector.load %arg1[%c0_3, %c0_4] : memref<8x4xf32, #tpu.memory_space<vmem>>, vector<8x4xf32>
    %10 = arith.truncf %9 : vector<8x4xf32> to vector<8x4xbf16>
    %c0_5 = arith.constant 0 : index
    %c0_6 = arith.constant 0 : index
    %11 = vector.load %arg2[%c0_5, %c0_6] : memref<8x8xf32, #tpu.memory_space<vmem>>, vector<8x8xf32>
    %12 = arith.truncf %11 : vector<8x8xf32> to vector<8x8xbf16>
    %c0_7 = arith.constant 0 : index
    %c0_8 = arith.constant 0 : index
    %13 = vector.load %arg5[%c0_7, %c0_8] : memref<4x64xbf16, #tpu.memory_space<vmem>>, vector<4x64xbf16>
    %cst = arith.constant dense<0.000000e+00> : vector<8x64xf32>
    %14 = tpu.matmul %10, %13, %cst {dimension_numbers = #tpu.dot_dimension_numbers<[1], [0], [0], [1], [0, 0, 1, 1], [], []>} : vector<8x4xbf16>, vector<4x64xbf16>, vector<8x64xf32> -> vector<8x64xf32>
    %c0_9 = arith.constant 0 : index
    %c0_10 = arith.constant 0 : index
    %15 = vector.load %arg6[%c0_9, %c0_10] : memref<8x64xbf16, #tpu.memory_space<vmem>>, vector<8x64xbf16>
    %cst_11 = arith.constant dense<0.000000e+00> : vector<8x64xf32>
    %16 = tpu.matmul %12, %15, %cst_11 {dimension_numbers = #tpu.dot_dimension_numbers<[1], [0], [0], [1], [0, 0, 1, 1], [], []>} : vector<8x8xbf16>, vector<8x64xbf16>, vector<8x64xf32> -> vector<8x64xf32>
    %17 = arith.addf %14, %16 : vector<8x64xf32>
    %c0_12 = arith.constant 0 : index
    %c0_13 = arith.constant 0 : index
    %18 = vector.load %arg7[%c0_12, %c0_13] : memref<3x64xbf16, #tpu.memory_space<vmem>>, vector<3x64xbf16>
    %cst_14 = arith.constant dense<0.000000e+00> : vector<8x64xf32>
    %19 = tpu.matmul %6, %18, %cst_14 {dimension_numbers = #tpu.dot_dimension_numbers<[1], [0], [0], [1], [0, 0, 1, 1], [], []>} : vector<8x3xbf16>, vector<3x64xbf16>, vector<8x64xf32> -> vector<8x64xf32>
    %20 = arith.addf %17, %19 : vector<8x64xf32>
    %c0_15 = arith.constant 0 : index
    %c0_16 = arith.constant 0 : index
    %21 = vector.load %arg8[%c0_15, %c0_16] : memref<3x64xbf16, #tpu.memory_space<vmem>>, vector<3x64xbf16>
    %cst_17 = arith.constant dense<0.000000e+00> : vector<8x64xf32>
    %22 = tpu.matmul %8, %21, %cst_17 {dimension_numbers = #tpu.dot_dimension_numbers<[1], [0], [0], [1], [0, 0, 1, 1], [], []>} : vector<8x3xbf16>, vector<3x64xbf16>, vector<8x64xf32> -> vector<8x64xf32>
    %23 = arith.addf %20, %22 : vector<8x64xf32>
    %c0_18 = arith.constant 0 : index
    %c0_19 = arith.constant 0 : index
    %24 = vector.load %arg9[%c0_18, %c0_19] : memref<1x64xf32, #tpu.memory_space<vmem>>, vector<1x64xf32>
    %25 = vector.broadcast %24 : vector<1x64xf32> to vector<8x64xf32>
    %26 = arith.addf %23, %25 : vector<8x64xf32>
    %cst_20 = arith.constant 0.000000e+00 : f32
    %27 = vector.broadcast %cst_20 : f32 to vector<8x64xf32>
    %28 = arith.maximumf %26, %27 : vector<8x64xf32>
    %29 = arith.truncf %28 : vector<8x64xf32> to vector<8x64xbf16>
    %c0_21 = arith.constant 0 : index
    %c0_22 = arith.constant 0 : index
    %30 = vector.load %arg10[%c0_21, %c0_22] : memref<64x64xbf16, #tpu.memory_space<vmem>>, vector<64x64xbf16>
    %cst_23 = arith.constant dense<0.000000e+00> : vector<8x64xf32>
    %31 = tpu.matmul %29, %30, %cst_23 {dimension_numbers = #tpu.dot_dimension_numbers<[1], [0], [0], [1], [0, 0, 1, 1], [], []>} : vector<8x64xbf16>, vector<64x64xbf16>, vector<8x64xf32> -> vector<8x64xf32>
    %c0_24 = arith.constant 0 : index
    %c0_25 = arith.constant 0 : index
    %32 = vector.load %arg11[%c0_24, %c0_25] : memref<1x64xf32, #tpu.memory_space<vmem>>, vector<1x64xf32>
    %33 = vector.broadcast %32 : vector<1x64xf32> to vector<8x64xf32>
    %34 = arith.addf %31, %33 : vector<8x64xf32>
    %cst_26 = arith.constant 0.000000e+00 : f32
    %35 = vector.broadcast %cst_26 : f32 to vector<8x64xf32>
    %36 = arith.maximumf %34, %35 : vector<8x64xf32>
    %37 = arith.truncf %36 : vector<8x64xf32> to vector<8x64xbf16>
    %c0_27 = arith.constant 0 : index
    %c0_28 = arith.constant 0 : index
    %38 = vector.load %arg12[%c0_27, %c0_28] : memref<64x128xbf16, #tpu.memory_space<vmem>>, vector<64x128xbf16>
    %cst_29 = arith.constant dense<0.000000e+00> : vector<8x128xf32>
    %39 = tpu.matmul %37, %38, %cst_29 {dimension_numbers = #tpu.dot_dimension_numbers<[1], [0], [0], [1], [0, 0, 1, 1], [], []>} : vector<8x64xbf16>, vector<64x128xbf16>, vector<8x128xf32> -> vector<8x128xf32>
    %40 = vector.extract_strided_slice %39 {offsets = [0, 0], sizes = [8, 4], strides = [1, 1]} : vector<8x128xf32> to vector<8x4xf32>
    %c0_30 = arith.constant 0 : index
    %c0_31 = arith.constant 0 : index
    %41 = vector.load %arg13[%c0_30, %c0_31] : memref<1x4xf32, #tpu.memory_space<vmem>>, vector<1x4xf32>
    %42 = vector.broadcast %41 : vector<1x4xf32> to vector<8x4xf32>
    %43 = arith.addf %40, %42 : vector<8x4xf32>
    %c0_32 = arith.constant 0 : index
    %c0_33 = arith.constant 0 : index
    %44 = vector.load %arg14[%c0_32, %c0_33] : memref<8x4xf32, #tpu.memory_space<vmem>>, vector<8x4xf32>
    tpu.vector_store %arg14[%c0_32, %c0_33], %43 {strides = array<i32>} : memref<8x4xf32, #tpu.memory_space<vmem>>, vector<8x4xf32>,
    return
  }
  func.func @transform_0(%arg0: i32) -> (i32, i32) {
    %c0_i32 = arith.constant 0 : i32
    %c0_i32_0 = arith.constant 0 : i32
    return %arg0, %c0_i32 : i32, i32
  }
  func.func @transform_1(%arg0: i32) -> (i32, i32) {
    %c0_i32 = arith.constant 0 : i32
    %c0_i32_0 = arith.constant 0 : i32
    return %arg0, %c0_i32 : i32, i32
  }
  func.func @transform_2(%arg0: i32) -> (i32, i32) {
    %c0_i32 = arith.constant 0 : i32
    %c0_i32_0 = arith.constant 0 : i32
    return %arg0, %c0_i32 : i32, i32
  }
  func.func @transform_3(%arg0: i32) -> (i32, i32) {
    %c0_i32 = arith.constant 0 : i32
    %c0_i32_0 = arith.constant 0 : i32
    %c0_i32_1 = arith.constant 0 : i32
    return %c0_i32, %c0_i32_0 : i32, i32
  }
  func.func @transform_4(%arg0: i32) -> (i32, i32) {
    %c0_i32 = arith.constant 0 : i32
    %c0_i32_0 = arith.constant 0 : i32
    %c0_i32_1 = arith.constant 0 : i32
    return %c0_i32, %c0_i32_0 : i32, i32
  }
  func.func @transform_5(%arg0: i32) -> (i32, i32) {
    %c0_i32 = arith.constant 0 : i32
    %c0_i32_0 = arith.constant 0 : i32
    %c0_i32_1 = arith.constant 0 : i32
    return %c0_i32, %c0_i32_0 : i32, i32
  }
  func.func @transform_6(%arg0: i32) -> (i32, i32) {
    %c0_i32 = arith.constant 0 : i32
    %c0_i32_0 = arith.constant 0 : i32
    %c0_i32_1 = arith.constant 0 : i32
    return %c0_i32, %c0_i32_0 : i32, i32
  }
  func.func @transform_7(%arg0: i32) -> (i32, i32) {
    %c0_i32 = arith.constant 0 : i32
    %c0_i32_0 = arith.constant 0 : i32
    %c0_i32_1 = arith.constant 0 : i32
    return %c0_i32, %c0_i32_0 : i32, i32
  }
  func.func @transform_8(%arg0: i32) -> (i32, i32) {
    %c0_i32 = arith.constant 0 : i32
    %c0_i32_0 = arith.constant 0 : i32
    %c0_i32_1 = arith.constant 0 : i32
    return %c0_i32, %c0_i32_0 : i32, i32
  }
  func.func @transform_9(%arg0: i32) -> (i32, i32) {
    %c0_i32 = arith.constant 0 : i32
    %c0_i32_0 = arith.constant 0 : i32
    %c0_i32_1 = arith.constant 0 : i32
    return %c0_i32, %c0_i32_0 : i32, i32
  }
  func.func @transform_10(%arg0: i32) -> (i32, i32) {
    %c0_i32 = arith.constant 0 : i32
    %c0_i32_0 = arith.constant 0 : i32
    %c0_i32_1 = arith.constant 0 : i32
    return %c0_i32, %c0_i32_0 : i32, i32
  }
  func.func @transform_11(%arg0: i32) -> (i32, i32) {
    %c0_i32 = arith.constant 0 : i32
    %c0_i32_0 = arith.constant 0 : i32
    %c0_i32_1 = arith.constant 0 : i32
    return %c0_i32, %c0_i32_0 : i32, i32
  }
  func.func @transform_12(%arg0: i32) -> (i32, i32) {
    %c0_i32 = arith.constant 0 : i32
    %c0_i32_0 = arith.constant 0 : i32
    %c0_i32_1 = arith.constant 0 : i32
    return %c0_i32, %c0_i32_0 : i32, i32
  }
  func.func @transform_13(%arg0: i32) -> (i32, i32) {
    %c0_i32 = arith.constant 0 : i32
    %c0_i32_0 = arith.constant 0 : i32
    return %arg0, %c0_i32 : i32, i32
  }
}

</mosaic_0001>

<llo_original>
// kernel: tpu_custom_call.1
$region0: #{tpu_custom_call.1}
  #allocation0 [shape = 'u32[]', space=smem, size = 0x4, offset = 0x4, fixed_abs, tag = 'smem constant byte address 0x4 - core index']
  #allocation1 [shape = 'u32[144,128]{1,0:T(1,128)}', space=vmem, size = 0x12000, scoped, tag = 'internal scratch']
  %s0 = inlined_call_operand.vmem [shape: f32[8,4], index: 0, kind: input, shape index: {}]
  %s1 = inlined_call_operand.vmem [shape: f32[8,8], index: 1, kind: input, shape index: {}]
  %s2 = inlined_call_operand.vmem [shape: f32[8,1], index: 2, kind: input, shape index: {}]
  %s3 = inlined_call_operand.vmem [shape: f32[1,3], index: 3, kind: input, shape index: {}]
  %s4 = inlined_call_operand.vmem [shape: bf16[4,64], index: 4, kind: input, shape index: {}]
  %s5 = inlined_call_operand.vmem [shape: bf16[8,64], index: 5, kind: input, shape index: {}]
  %s6 = inlined_call_operand.vmem [shape: bf16[3,64], index: 6, kind: input, shape index: {}]
  %s7 = inlined_call_operand.vmem [shape: bf16[3,64], index: 7, kind: input, shape index: {}]
  %s8 = inlined_call_operand.vmem [shape: f32[1,64], index: 8, kind: input, shape index: {}]
  %s9 = inlined_call_operand.vmem [shape: bf16[64,64], index: 9, kind: input, shape index: {}]
  %s10 = inlined_call_operand.vmem [shape: f32[1,64], index: 10, kind: input, shape index: {}]
  %s11 = inlined_call_operand.hbm [shape: bf16[64,128], index: 11, kind: input, shape index: {}]
  %s12 = inlined_call_operand.vmem [shape: f32[1,4], index: 12, kind: input, shape index: {}]
  %s13 = inlined_call_operand.vmem [shape: f32[8,4], index: 13, kind: output, shape index: {}]
  %s14 = sld [smem:[#allocation0]]
  $region66: #{tpu_custom_call.1} parent=0
    _
  %s16 = ssub.s32 1, %s14
  %s17 = scalar_select 0, %s16, %s14
  $region1: #{tpu_custom_call.1} parent=0
    #allocation2 [shape = 'u8[16384]{0}', space=vmem, size = 0x4000, scoped, tag = 'input window, operand 11, single buffered']
    #allocation3 [shape = 's32[1]{0}', space=sflag, size = 0x4, scoped, tag = 'scoped memory for tpu_custom_call.1']
    %18 = vsyncpa [#allocation3], 0
    // Predicated region
    $region2: #{tpu_custom_call.1} parent=1 // pred_check
      _
    $region3: #{tpu_custom_call.1} parent=1 // pred_check_branch
      %20 = sbr.rel (0) target = $region5
    $region4: #{tpu_custom_call.1} parent=1 // pred_region
      _
    $region5: #{tpu_custom_call.1} parent=1 // pred_fallthru
      _
    // Predicated region
    $region6: #{tpu_custom_call.1} parent=1 // pred_check
      _
    $region7: #{tpu_custom_call.1} parent=1 // pred_check_branch
      %22 = sbr.rel (0) target = $region9
    $region8: #{tpu_custom_call.1} parent=1 // pred_region
      _
    $region9: #{tpu_custom_call.1} parent=1 // pred_fallthru
      _
    // Predicated region
    $region10: #{tpu_custom_call.1} parent=1 // pred_check
      _
    $region11: #{tpu_custom_call.1} parent=1 // pred_check_branch
      %24 = sbr.rel (0) target = $region13
    $region12: #{tpu_custom_call.1} parent=1 // pred_region
      _
    $region13: #{tpu_custom_call.1} parent=1 // pred_fallthru
      _
    // Predicated region
    $region14: #{tpu_custom_call.1} parent=1 // pred_check
      _
    $region15: #{tpu_custom_call.1} parent=1 // pred_check_branch
      %26 = sbr.rel (0) target = $region17
    $region16: #{tpu_custom_call.1} parent=1 // pred_region
      _
    $region17: #{tpu_custom_call.1} parent=1 // pred_fallthru
      _
    // Predicated region
    $region18: #{tpu_custom_call.1} parent=1 // pred_check
      _
    $region19: #{tpu_custom_call.1} parent=1 // pred_check_branch
      %28 = sbr.rel (0) target = $region21
    $region20: #{tpu_custom_call.1} parent=1 // pred_region
      _
    $region21: #{tpu_custom_call.1} parent=1 // pred_fallthru
      _
    // Predicated region
    $region22: #{tpu_custom_call.1} parent=1 // pred_check
      _
    $region23: #{tpu_custom_call.1} parent=1 // pred_check_branch
      %30 = sbr.rel (0) target = $region25
    $region24: #{tpu_custom_call.1} parent=1 // pred_region
      _
    $region25: #{tpu_custom_call.1} parent=1 // pred_fallthru
      _
    // Predicated region
    $region26: #{tpu_custom_call.1} parent=1 // pred_check
      _
    $region27: #{tpu_custom_call.1} parent=1 // pred_check_branch
      %32 = sbr.rel (0) target = $region29
    $region28: #{tpu_custom_call.1} parent=1 // pred_region
      _
    $region29: #{tpu_custom_call.1} parent=1 // pred_fallthru
      _
    // Predicated region
    $region30: #{tpu_custom_call.1} parent=1 // pred_check
      _
    $region31: #{tpu_custom_call.1} parent=1 // pred_check_branch
      %34 = sbr.rel (0) target = $region33
    $region32: #{tpu_custom_call.1} parent=1 // pred_region
      _
    $region33: #{tpu_custom_call.1} parent=1 // pred_fallthru
      _
    // Predicated region
    $region34: #{tpu_custom_call.1} parent=1 // pred_check
      _
    $region35: #{tpu_custom_call.1} parent=1 // pred_check_branch
      %36 = sbr.rel (0) target = $region37
    $region36: #{tpu_custom_call.1} parent=1 // pred_region
      _
    $region37: #{tpu_custom_call.1} parent=1 // pred_fallthru
      _
    // Predicated region
    $region38: #{tpu_custom_call.1} parent=1 // pred_check
      _
    $region39: #{tpu_custom_call.1} parent=1 // pred_check_branch
      %38 = sbr.rel (0) target = $region41
    $region40: #{tpu_custom_call.1} parent=1 // pred_region
      _
    $region41: #{tpu_custom_call.1} parent=1 // pred_fallthru
      _
    // Predicated region
    $region42: #{tpu_custom_call.1} parent=1 // pred_check
      _
    $region43: #{tpu_custom_call.1} parent=1 // pred_check_branch
      %40 = sbr.rel (0) target = $region45
    $region44: #{tpu_custom_call.1} parent=1 // pred_region
      _
    $region45: #{tpu_custom_call.1} parent=1 // pred_fallthru
      _
    // Predicated region
    $region46: #{tpu_custom_call.1} parent=1 // pred_check
      _
    $region47: #{tpu_custom_call.1} parent=1 // pred_check_branch
      %42 = sbr.rel (0) target = $region49
    $region48: #{tpu_custom_call.1} parent=1 // pred_region
      %s44 = ssub.s32 512, 512
      %45 = vsyncadd [#allocation3], %s44
      %s46 = sshll.u32 [#allocation2], 4
      %s47 = int_to_ptr.vmem [resolvable:$true] %s46
      %52 = dma.hbm_to_vmem [thread:$0]  %s11, 512, %s47, [#allocation3], 64, 64, 4
    $region49: #{tpu_custom_call.1} parent=1 // pred_fallthru
      _
    // Predicated region
    $region50: #{tpu_custom_call.1} parent=1 // pred_check
      _
    $region51: #{tpu_custom_call.1} parent=1 // pred_check_branch
      %54 = sbr.rel (0) target = $region53
    $region52: #{tpu_custom_call.1} parent=1 // pred_region
      _
    $region53: #{tpu_custom_call.1} parent=1 // pred_fallthru
      _
    // Predicated region
    $region54: #{tpu_custom_call.1} parent=1 // pred_check
      _
    $region55: #{tpu_custom_call.1} parent=1 // pred_check_branch
      %56 = sbr.rel (0) target = $region57
    $region56: #{tpu_custom_call.1} parent=1 // pred_region
      %57 = dma.done [#allocation3], 512
    $region57: #{tpu_custom_call.1} parent=1 // pred_fallthru
      _
    %v59 = vld [vmem:[%s2] sm:$0xff]
    %v60 = vld [vmem:[%s3] sm:$0x1]
    %62 = vset.pattern.permute.xlu0 0
    %63 = vperm.xlu0 %62, %v59
    %v64 = vpop.permute.xlu0 %63
    %v67 = vlaneseq
    %v68 = vshrl.u32 %v67, 7
    %v69 = vsub.s32 0, %v68
    %v70 = vrot.slane %v60, %v69
    %v72 = vmul.f32 %v64, %v70
    %v73 = vand.u32 2147483647, %v72
    %vm74 = vcmp.le.f32.partialorder %v73, 0.7853982
    %vm75 = vcmp.lt.s32.totalorder %v72, 0
    %v76 = vand.u32 %v72, 2139095040
    %v77 = vshrl.u32 %v76, 23
    %v78 = vsub.s32 %v77, 127
    %v79 = vand.u32 2147483647, %v72
    %v80 = vand.u32 %v79, 8388607
    %v81 = vor.u32 %v80, 8388608
    %v82 = vsub.s32 0, %v81
    %v83 = vadd.s32 %v78, 1
    %vm84 = vcmp.gt.s32.totalorder %v83, 0
    %v85 = vsel %vm84, %v83, 0
    %v86 = vshrl.u32 %v85, 5
    %v87 = vand.u32 %v85, 31
    %v88 = vsub.s32 32, %v87
    %v89 = vshrl.u32 683565275, %v88
    %v90 = vshll.u32 683565275, %v87
    %v91 = vshrl.u32 2475754826, %v88
    %v92 = vor.u32 %v90, %v91
    %v93 = vshll.u32 2475754826, %v87
    %v94 = vshrl.u32 2131351028, %v88
    %v95 = vor.u32 %v93, %v94
    %v96 = vshll.u32 2131351028, %v87
    %v97 = vshrl.u32 2102212464, %v88
    %v98 = vor.u32 %v96, %v97
    %v99 = vshll.u32 2102212464, %v87
    %v100 = vshrl.u32 920167782, %v88
    %v101 = vor.u32 %v99, %v100
    %v102 = vshll.u32 920167782, %v87
    %v103 = vshrl.u32 1326507024, %v88
    %v104 = vor.u32 %v102, %v103
    %vm105 = vcmp.lt.s32.totalorder %v86, 1
    %vm106 = vcmp.lt.s32.totalorder %v86, 2
    %vm107 = vcmp.lt.s32.totalorder %v86, 3
    %vm108 = vcmp.lt.s32.totalorder %v86, 4
    %v109 = vsel %vm105, %v89, %v92
    %v110 = vsel %vm108, %v98, 2102212464
    %v111 = vsel %vm107, %v95, %v110
    %v112 = vsel %vm106, %v109, %v111
    %v113 = vsel %vm105, %v92, %v95
    %v114 = vsel %vm108, %v101, 920167782
    %v115 = vsel %vm107, %v98, %v114
    %v116 = vsel %vm106, %v113, %v115
    %v117 = vsel %vm105, %v95, %v98
    %v118 = vsel %vm108, %v104, 1326507024
    %v119 = vsel %vm107, %v101, %v118
    %v120 = vsel %vm106, %v117, %v119
    %v121 = vshll.u32 %v81, 8
    %v122 = vmul.u32.u64.compose %v121, %v120
    %v123 = vextract.low.u32 %v122
    %v124 = vextract.high.u32 %v122
    %v125 = vmul.u32.u64.compose %v121, %v116
    %v126 = vextract.low.u32 %v125
    %v127 = vextract.high.u32 %v125
    %v128 = vmul.u32 %v121, %v112
    %v129 = vadd.s32 %v124, %v126
    %vm130 = vc.u32 %v124, %v126
    %v131 = vadd.s32 %v127, 1
    %v132 = vsel %vm130, %v131, %v127
    %v133 = vadd.s32 %v128, %v132
    %v134 = vadd.s32 %v133, 536870912
    %v135 = vshrl.u32 %v134, 30
    %v136 = vshll.u32 %v135, 30
    %v137 = vsub.s32 %v133, %v136
    %vm138 = vcmp.lt.s32.totalorder %v137, 0
    %v139 = vsub.s32 0, %v137
    %v140 = vsel %vm138, %v139, %v137
    %v141 = vclz %v140
    %v142 = vsub.s32 %v141, 2
    %vm143 = vcmp.gt.s32.totalorder 0, %v142
    %v144 = vsel %vm143, 0, %v142
    %v145 = vsub.s32 32, %v144
    %v146 = vshll.u32 %v137, %v144
    %v147 = vshrl.u32 %v129, %v145
    %v148 = vor.u32 %v146, %v147
    %v149 = vsub.s32 4294967266, %v144
    %v150 = vadd.s32 %v149, 127
    %v151 = vshll.u32 %v150, 23
    %v152 = vor.u32 4788187, %v151
    %v153 = vand.u32 2147483647, %v152
    %v155 = vcvt.s32.f32 %v148
    %v156 = vmul.f32 %v155, %v153
    %v157 = vxor.u32 %v156, 2147483648
    %v158 = vsel %vm75, %v157, %v156
    %v159 = vsub.s32 4, %v135
    %v160 = vsel %vm75, %v159, %v135
    %v161 = vsel %vm74, %v72, %v158
    %v162 = vsel %vm74, 0, %v160
    %v163 = vcosq.f32.pop %v161
    %v164 = vsinq.f32.pop %v161
    %vm165 = vweird.f32 %v72
    %v166 = vand.u32 %v162, 3
    %vm167 = vcmp.lt.s32.totalorder %v166, 2
    %vm168 = vcmp.eq.s32.totalorder %v166, 0
    %v169 = vxor.u32 %v164, 2147483648
    %v170 = vsel %vm168, %v163, %v169
    %vm171 = vcmp.eq.s32.totalorder %v166, 2
    %v172 = vxor.u32 %v163, 2147483648
    %v173 = vsel %vm171, %v172, %v164
    %v174 = vsel %vm167, %v170, %v173
    %v175 = vsel %vm165, nan, %v174
    %v176 = vpack.c.bf16 %v175, %v175
    %v177 = vand.u32 2147483647, %v72
    %vm178 = vcmp.le.f32.partialorder %v177, 0.7853982
    %vm179 = vcmp.lt.s32.totalorder %v72, 0
    %v180 = vand.u32 %v72, 2139095040
    %v181 = vshrl.u32 %v180, 23
    %v182 = vsub.s32 %v181, 127
    %v183 = vand.u32 2147483647, %v72
    %v184 = vand.u32 %v183, 8388607
    %v185 = vor.u32 %v184, 8388608
    %v186 = vsub.s32 0, %v185
    %v187 = vadd.s32 %v182, 1
    %vm188 = vcmp.gt.s32.totalorder %v187, 0
    %v189 = vsel %vm188, %v187, 0
    %v190 = vshrl.u32 %v189, 5
    %v191 = vand.u32 %v189, 31
    %v192 = vsub.s32 32, %v191
    %v193 = vshrl.u32 683565275, %v192
    %v194 = vshll.u32 683565275, %v191
    %v195 = vshrl.u32 2475754826, %v192
    %v196 = vor.u32 %v194, %v195
    %v197 = vshll.u32 2475754826, %v191
    %v198 = vshrl.u32 2131351028, %v192
    %v199 = vor.u32 %v197, %v198
    %v200 = vshll.u32 2131351028, %v191
    %v201 = vshrl.u32 2102212464, %v192
    %v202 = vor.u32 %v200, %v201
    %v203 = vshll.u32 2102212464, %v191
    %v204 = vshrl.u32 920167782, %v192
    %v205 = vor.u32 %v203, %v204
    %v206 = vshll.u32 920167782, %v191
    %v207 = vshrl.u32 1326507024, %v192
    %v208 = vor.u32 %v206, %v207
    %vm209 = vcmp.lt.s32.totalorder %v190, 1
    %vm210 = vcmp.lt.s32.totalorder %v190, 2
    %vm211 = vcmp.lt.s32.totalorder %v190, 3
    %vm212 = vcmp.lt.s32.totalorder %v190, 4
    %v213 = vsel %vm209, %v193, %v196
    %v214 = vsel %vm212, %v202, 2102212464
    %v215 = vsel %vm211, %v199, %v214
    %v216 = vsel %vm210, %v213, %v215
    %v217 = vsel %vm209, %v196, %v199
    %v218 = vsel %vm212, %v205, 920167782
    %v219 = vsel %vm211, %v202, %v218
    %v220 = vsel %vm210, %v217, %v219
    %v221 = vsel %vm209, %v199, %v202
    %v222 = vsel %vm212, %v208, 1326507024
    %v223 = vsel %vm211, %v205, %v222
    %v224 = vsel %vm210, %v221, %v223
    %v225 = vshll.u32 %v185, 8
    %v226 = vmul.u32.u64.compose %v225, %v224
    %v227 = vextract.low.u32 %v226
    %v228 = vextract.high.u32 %v226
    %v229 = vmul.u32.u64.compose %v225, %v220
    %v230 = vextract.low.u32 %v229
    %v231 = vextract.high.u32 %v229
    %v232 = vmul.u32 %v225, %v216
    %v233 = vadd.s32 %v228, %v230
    %vm234 = vc.u32 %v228, %v230
    %v235 = vadd.s32 %v231, 1
    %v236 = vsel %vm234, %v235, %v231
    %v237 = vadd.s32 %v232, %v236
    %v238 = vadd.s32 %v237, 536870912
    %v239 = vshrl.u32 %v238, 30
    %v240 = vshll.u32 %v239, 30
    %v241 = vsub.s32 %v237, %v240
    %vm242 = vcmp.lt.s32.totalorder %v241, 0
    %v243 = vsub.s32 0, %v241
    %v244 = vsel %vm242, %v243, %v241
    %v245 = vclz %v244
    %v246 = vsub.s32 %v245, 2
    %vm247 = vcmp.gt.s32.totalorder 0, %v246
    %v248 = vsel %vm247, 0, %v246
    %v249 = vsub.s32 32, %v248
    %v250 = vshll.u32 %v241, %v248
    %v251 = vshrl.u32 %v233, %v249
    %v252 = vor.u32 %v250, %v251
    %v253 = vsub.s32 4294967266, %v248
    %v254 = vadd.s32 %v253, 127
    %v255 = vshll.u32 %v254, 23
    %v256 = vor.u32 4788187, %v255
    %v257 = vand.u32 2147483647, %v256
    %v259 = vcvt.s32.f32 %v252
    %v260 = vmul.f32 %v259, %v257
    %v261 = vxor.u32 %v260, 2147483648
    %v262 = vsel %vm179, %v261, %v260
    %v263 = vsub.s32 4, %v239
    %v264 = vsel %vm179, %v263, %v239
    %v265 = vsel %vm178, %v72, %v262
    %v266 = vsel %vm178, 0, %v264
    %v267 = vcosq.f32.pop %v265
    %v268 = vsinq.f32.pop %v265
    %vm269 = vweird.f32 %v72
    %v270 = vadd.s32 %v266, 3
    %v271 = vand.u32 %v270, 3
    %vm272 = vcmp.lt.s32.totalorder %v271, 2
    %vm273 = vcmp.eq.s32.totalorder %v271, 0
    %v274 = vxor.u32 %v268, 2147483648
    %v275 = vsel %vm273, %v267, %v274
    %vm276 = vcmp.eq.s32.totalorder %v271, 2
    %v277 = vxor.u32 %v267, 2147483648
    %v278 = vsel %vm276, %v277, %v268
    %v279 = vsel %vm272, %v275, %v278
    %v280 = vsel %vm269, nan, %v279
    %v281 = vpack.c.bf16 %v280, %v280
    %v282 = vld [vmem:[%s0] sm:$0xff]
    %v283 = vpack.c.bf16 %v282, %v282
    %v284 = vld [vmem:[%s1] sm:$0xff]
    %v285 = vpack.c.bf16 %v284, %v284
    %v286 = vld [vmem:[%s4] sm:$0x3]
    %v287 = vld [vmem:[%s5] sm:$0xf]
    %vm288 = vcmask 64512
    %v290 = vsel %vm288, %v285, 0
    %vm292 = vcmask 1043456
    %v294 = vsel %vm292, %v287, 0
    %296 = vmatprep.subr.bf16.mxu0 0
    %297 = vmatpush1.bf16.msra.mxu0 %v294
    %298 = vmatprep.subr.bf16.mxu0 0
    %299 = vmatpush1.bf16.msra.mxu0 0
    %300 = vmatprep.subr.bf16.mxu0 0
    %301 = vmatpush1.bf16.msra.mxu0 0
    %302 = vmatprep.subr.bf16.mxu0 0
    %303 = vmatpush1.bf16.msra.mxu0 0
    %304 = vmatprep.subr.bf16.mxu0 0
    %305 = vmatpush1.bf16.msra.mxu0 0
    %306 = vmatprep.subr.bf16.mxu0 0
    %307 = vmatpush1.bf16.msra.mxu0 0
    %308 = vmatprep.subr.bf16.mxu0 0
    %309 = vmatpush1.bf16.msra.mxu0 0
    %310 = vmatprep.subr.bf16.mxu0 0
    %311 = vmatpush1.bf16.msra.mxu0 0
    %312 = vmatprep.subr.bf16.mxu0 0
    %313 = vmatpush1.bf16.msra.mxu0 0
    %314 = vmatprep.subr.bf16.mxu0 0
    %315 = vmatpush1.bf16.msra.mxu0 0
    %316 = vmatprep.subr.bf16.mxu0 0
    %317 = vmatpush1.bf16.msra.mxu0 0
    %318 = vmatprep.subr.bf16.mxu0 0
    %319 = vmatpush1.bf16.msra.mxu0 0
    %320 = vmatprep.subr.bf16.mxu0 0
    %321 = vmatpush1.bf16.msra.mxu0 0
    %322 = vmatprep.subr.bf16.mxu0 0
    %323 = vmatpush1.bf16.msra.mxu0 0
    %324 = vmatprep.subr.bf16.mxu0 0
    %325 = vmatpush1.bf16.msra.mxu0 0
    %326 = vmatprep.subr.bf16.mxu0 0
    %327 = vmatpush1.bf16.msra.mxu0 0
    %328 = vmatprep.mubr.bf16.mxu0 0
    %329 = vmatmul.mubr.bf16.gmra.mrb[0].mxu0 %v290
    %v330 = vpop.f32.mrb[0].mxu0
    %v331 = vadd.f32 0.0, %v330
    %v332 = vpop.f32.mrb[0].mxu0
    %v333 = vpop.f32.mrb[0].mxu0
    %v334 = vpop.f32.mrb[0].mxu0
    %335 = vdwg.mxu0
    %vm336 = vcmask 31744
    %v338 = vsel %vm336, %v283, 0
    %vm340 = vcmask 1041408
    %v342 = vsel %vm340, %v286, 0
    %344 = vmatprep.subr.bf16.mxu0 0
    %345 = vmatpush1.bf16.msra.mxu0 %v342
    %346 = vmatprep.subr.bf16.mxu0 0
    %347 = vmatpush1.bf16.msra.mxu0 0
    %348 = vmatprep.subr.bf16.mxu0 0
    %349 = vmatpush1.bf16.msra.mxu0 0
    %350 = vmatprep.subr.bf16.mxu0 0
    %351 = vmatpush1.bf16.msra.mxu0 0
    %352 = vmatprep.subr.bf16.mxu0 0
    %353 = vmatpush1.bf16.msra.mxu0 0
    %354 = vmatprep.subr.bf16.mxu0 0
    %355 = vmatpush1.bf16.msra.mxu0 0
    %356 = vmatprep.subr.bf16.mxu0 0
    %357 = vmatpush1.bf16.msra.mxu0 0
    %358 = vmatprep.subr.bf16.mxu0 0
    %359 = vmatpush1.bf16.msra.mxu0 0
    %360 = vmatprep.subr.bf16.mxu0 0
    %361 = vmatpush1.bf16.msra.mxu0 0
    %362 = vmatprep.subr.bf16.mxu0 0
    %363 = vmatpush1.bf16.msra.mxu0 0
    %364 = vmatprep.subr.bf16.mxu0 0
    %365 = vmatpush1.bf16.msra.mxu0 0
    %366 = vmatprep.subr.bf16.mxu0 0
    %367 = vmatpush1.bf16.msra.mxu0 0
    %368 = vmatprep.subr.bf16.mxu0 0
    %369 = vmatpush1.bf16.msra.mxu0 0
    %370 = vmatprep.subr.bf16.mxu0 0
    %371 = vmatpush1.bf16.msra.mxu0 0
    %372 = vmatprep.subr.bf16.mxu0 0
    %373 = vmatpush1.bf16.msra.mxu0 0
    %374 = vmatprep.subr.bf16.mxu0 0
    %375 = vmatpush1.bf16.msra.mxu0 0
    %376 = vmatprep.mubr.bf16.mxu0 0
    %377 = vmatmul.mubr.bf16.gmra.mrb[0].mxu0 %v338
    %v378 = vpop.f32.mrb[0].mxu0
    %v379 = vadd.f32 %v331, %v378
    %v380 = vpop.f32.mrb[0].mxu0
    %v381 = vpop.f32.mrb[0].mxu0
    %v382 = vpop.f32.mrb[0].mxu0
    %383 = vdwg.mxu0
    %v384 = vld [vmem:[%s6] sm:$0x3]
    %vm385 = vcmask 23552
    %v387 = vsel %vm385, %v176, 0
    %vm389 = vcmask 1040384
    %v390 = vsel %vm389, 4294967295, 65535
    %v391 = vsel %vm340, %v390, 0
    %v393 = vand.u32 %v384, %v391
    %395 = vmatprep.subr.bf16.mxu0 0
    %396 = vmatpush1.bf16.msra.mxu0 %v393
    %397 = vmatprep.subr.bf16.mxu0 0
    %398 = vmatpush1.bf16.msra.mxu0 0
    %399 = vmatprep.subr.bf16.mxu0 0
    %400 = vmatpush1.bf16.msra.mxu0 0
    %401 = vmatprep.subr.bf16.mxu0 0
    %402 = vmatpush1.bf16.msra.mxu0 0
    %403 = vmatprep.subr.bf16.mxu0 0
    %404 = vmatpush1.bf16.msra.mxu0 0
    %405 = vmatprep.subr.bf16.mxu0 0
    %406 = vmatpush1.bf16.msra.mxu0 0
    %407 = vmatprep.subr.bf16.mxu0 0
    %408 = vmatpush1.bf16.msra.mxu0 0
    %409 = vmatprep.subr.bf16.mxu0 0
    %410 = vmatpush1.bf16.msra.mxu0 0
    %411 = vmatprep.subr.bf16.mxu0 0
    %412 = vmatpush1.bf16.msra.mxu0 0
    %413 = vmatprep.subr.bf16.mxu0 0
    %414 = vmatpush1.bf16.msra.mxu0 0
    %415 = vmatprep.subr.bf16.mxu0 0
    %416 = vmatpush1.bf16.msra.mxu0 0
    %417 = vmatprep.subr.bf16.mxu0 0
    %418 = vmatpush1.bf16.msra.mxu0 0
    %419 = vmatprep.subr.bf16.mxu0 0
    %420 = vmatpush1.bf16.msra.mxu0 0
    %421 = vmatprep.subr.bf16.mxu0 0
    %422 = vmatpush1.bf16.msra.mxu0 0
    %423 = vmatprep.subr.bf16.mxu0 0
    %424 = vmatpush1.bf16.msra.mxu0 0
    %425 = vmatprep.subr.bf16.mxu0 0
    %426 = vmatpush1.bf16.msra.mxu0 0
    %427 = vmatprep.mubr.bf16.mxu0 0
    %428 = vmatmul.mubr.bf16.gmra.mrb[0].mxu0 %v387
    %v429 = vpop.f32.mrb[0].mxu0
    %v430 = vadd.f32 0.0, %v429
    %v431 = vpop.f32.mrb[0].mxu0
    %v432 = vpop.f32.mrb[0].mxu0
    %v433 = vpop.f32.mrb[0].mxu0
    %434 = vdwg.mxu0
    %v435 = vadd.f32 %v379, %v430
    %v436 = vld [vmem:[%s7] sm:$0x3]
    %v438 = vsel %vm385, %v281, 0
    %v441 = vand.u32 %v436, %v391
    %443 = vmatprep.subr.bf16.mxu0 0
    %444 = vmatpush1.bf16.msra.mxu0 %v441
    %445 = vmatprep.subr.bf16.mxu0 0
    %446 = vmatpush1.bf16.msra.mxu0 0
    %447 = vmatprep.subr.bf16.mxu0 0
    %448 = vmatpush1.bf16.msra.mxu0 0
    %449 = vmatprep.subr.bf16.mxu0 0
    %450 = vmatpush1.bf16.msra.mxu0 0
    %451 = vmatprep.subr.bf16.mxu0 0
    %452 = vmatpush1.bf16.msra.mxu0 0
    %453 = vmatprep.subr.bf16.mxu0 0
    %454 = vmatpush1.bf16.msra.mxu0 0
    %455 = vmatprep.subr.bf16.mxu0 0
    %456 = vmatpush1.bf16.msra.mxu0 0
    %457 = vmatprep.subr.bf16.mxu0 0
    %458 = vmatpush1.bf16.msra.mxu0 0
    %459 = vmatprep.subr.bf16.mxu0 0
    %460 = vmatpush1.bf16.msra.mxu0 0
    %461 = vmatprep.subr.bf16.mxu0 0
    %462 = vmatpush1.bf16.msra.mxu0 0
    %463 = vmatprep.subr.bf16.mxu0 0
    %464 = vmatpush1.bf16.msra.mxu0 0
    %465 = vmatprep.subr.bf16.mxu0 0
    %466 = vmatpush1.bf16.msra.mxu0 0
    %467 = vmatprep.subr.bf16.mxu0 0
    %468 = vmatpush1.bf16.msra.mxu0 0
    %469 = vmatprep.subr.bf16.mxu0 0
    %470 = vmatpush1.bf16.msra.mxu0 0
    %471 = vmatprep.subr.bf16.mxu0 0
    %472 = vmatpush1.bf16.msra.mxu0 0
    %473 = vmatprep.subr.bf16.mxu0 0
    %474 = vmatpush1.bf16.msra.mxu0 0
    %475 = vmatprep.mubr.bf16.mxu0 0
    %476 = vmatmul.mubr.bf16.gmra.mrb[0].mxu0 %v438
    %v477 = vpop.f32.mrb[0].mxu0
    %v478 = vadd.f32 0.0, %v477
    %v479 = vpop.f32.mrb[0].mxu0
    %v480 = vpop.f32.mrb[0].mxu0
    %v481 = vpop.f32.mrb[0].mxu0
    %482 = vdwg.mxu0
    %v483 = vadd.f32 %v435, %v478
    %v484 = vld [vmem:[%s8] sm:$0x1]
    %v486 = vlaneseq
    %v487 = vshrl.u32 %v486, 7
    %v488 = vsub.s32 0, %v487
    %v489 = vrot.slane %v484, %v488
    %v491 = vadd.f32 %v483, %v489
    %v492 = vmax.f32 %v491, 0.0
    %v493 = vpack.c.bf16 %v492, %v492
    %v494 = vld [vmem:[%s9] sm:$0xf]
    %v495 = vld [vmem:[%s9 + $0x4] sm:$0xf]
    %v496 = vld [vmem:[%s9 + $0x8] sm:$0xf]
    %v497 = vld [vmem:[%s9 + $0xc] sm:$0xf]
    %v498 = vld [vmem:[%s9 + $0x10] sm:$0xf]
    %v499 = vld [vmem:[%s9 + $0x14] sm:$0xf]
    %v500 = vld [vmem:[%s9 + $0x18] sm:$0xf]
    %v501 = vld [vmem:[%s9 + $0x1c] sm:$0xf]
    %v502 = vld [vmem:[%s10] sm:$0x1]
    %v504 = vlaneseq
    %v505 = vshrl.u32 %v504, 7
    %v506 = vsub.s32 0, %v505
    %v507 = vrot.slane %v502, %v506
    %v517 = vunpack.c.l.b16 %v494
    %v518 = vunpack.c.l.b16 %v495
    %v519 = vunpack.c.l.b16 %v496
    %v520 = vunpack.c.l.b16 %v497
    %v521 = vunpack.c.l.b16 %v498
    %v522 = vunpack.c.l.b16 %v499
    %v523 = vunpack.c.l.b16 %v500
    %v524 = vunpack.c.l.b16 %v501
    %v525 = vpack.c.b16 %v518, %v517
    %v526 = vpack.c.b16 %v520, %v519
    %v527 = vpack.c.b16 %v522, %v521
    %v528 = vpack.c.b16 %v524, %v523
    %vm533 = vcmask 523264
    %v535 = vsel %vm533, %v493, 0
    %537 = vmatprep.subr.bf16.mxu0 0
    %538 = vmatpush1.bf16.msra.mxu0 %v525
    %539 = vmatprep.subr.bf16.mxu0 0
    %540 = vmatpush1.bf16.msra.mxu0 %v526
    %541 = vmatprep.subr.bf16.mxu0 0
    %542 = vmatpush1.bf16.msra.mxu0 %v527
    %543 = vmatprep.subr.bf16.mxu0 0
    %544 = vmatpush1.bf16.msra.mxu0 %v528
    %545 = vmatprep.subr.bf16.mxu0 0
    %546 = vmatpush1.bf16.msra.mxu0 0
    %547 = vmatprep.subr.bf16.mxu0 0
    %548 = vmatpush1.bf16.msra.mxu0 0
    %549 = vmatprep.subr.bf16.mxu0 0
    %550 = vmatpush1.bf16.msra.mxu0 0
    %551 = vmatprep.subr.bf16.mxu0 0
    %552 = vmatpush1.bf16.msra.mxu0 0
    %553 = vmatprep.subr.bf16.mxu0 0
    %554 = vmatpush1.bf16.msra.mxu0 0
    %555 = vmatprep.subr.bf16.mxu0 0
    %556 = vmatpush1.bf16.msra.mxu0 0
    %557 = vmatprep.subr.bf16.mxu0 0
    %558 = vmatpush1.bf16.msra.mxu0 0
    %559 = vmatprep.subr.bf16.mxu0 0
    %560 = vmatpush1.bf16.msra.mxu0 0
    %561 = vmatprep.subr.bf16.mxu0 0
    %562 = vmatpush1.bf16.msra.mxu0 0
    %563 = vmatprep.subr.bf16.mxu0 0
    %564 = vmatpush1.bf16.msra.mxu0 0
    %565 = vmatprep.subr.bf16.mxu0 0
    %566 = vmatpush1.bf16.msra.mxu0 0
    %567 = vmatprep.subr.bf16.mxu0 0
    %568 = vmatpush1.bf16.msra.mxu0 0
    %569 = vmatprep.mubr.bf16.mxu0 0
    %570 = vmatmul.mubr.bf16.gmra.mrb[0].mxu0 %v535
    %v571 = vpop.f32.mrb[0].mxu0
    %v572 = vadd.f32 %v507, %v571
    %v573 = vpop.f32.mrb[0].mxu0
    %v574 = vpop.f32.mrb[0].mxu0
    %v575 = vpop.f32.mrb[0].mxu0
    %576 = vdwg.mxu0
    %v577 = vmax.f32 %v572, 0.0
    %v578 = vpack.c.bf16 %v577, %v577
    %v579 = vld [vmem:[#allocation2] sm:$0xf]
    %v580 = vld [vmem:[#allocation2 + $0x4] sm:$0xf]
    %v581 = vld [vmem:[#allocation2 + $0x8] sm:$0xf]
    %v582 = vld [vmem:[#allocation2 + $0xc] sm:$0xf]
    %v583 = vld [vmem:[#allocation2 + $0x10] sm:$0xf]
    %v584 = vld [vmem:[#allocation2 + $0x14] sm:$0xf]
    %v585 = vld [vmem:[#allocation2 + $0x18] sm:$0xf]
    %v586 = vld [vmem:[#allocation2 + $0x1c] sm:$0xf]
    %v595 = vunpack.c.l.b16 %v579
    %v596 = vunpack.c.l.b16 %v580
    %v597 = vunpack.c.l.b16 %v581
    %v598 = vunpack.c.l.b16 %v582
    %v599 = vunpack.c.l.b16 %v583
    %v600 = vunpack.c.l.b16 %v584
    %v601 = vunpack.c.l.b16 %v585
    %v602 = vunpack.c.l.b16 %v586
    %v603 = vpack.c.b16 %v596, %v595
    %v604 = vpack.c.b16 %v598, %v597
    %v605 = vpack.c.b16 %v600, %v599
    %v606 = vpack.c.b16 %v602, %v601
    %v612 = vsel %vm533, %v578, 0
    %614 = vmatprep.subr.bf16.mxu0 0
    %615 = vmatpush1.bf16.msra.mxu0 %v603
    %616 = vmatprep.subr.bf16.mxu0 0
    %617 = vmatpush1.bf16.msra.mxu0 %v604
    %618 = vmatprep.subr.bf16.mxu0 0
    %619 = vmatpush1.bf16.msra.mxu0 %v605
    %620 = vmatprep.subr.bf16.mxu0 0
    %621 = vmatpush1.bf16.msra.mxu0 %v606
    %622 = vmatprep.subr.bf16.mxu0 0
    %623 = vmatpush1.bf16.msra.mxu0 0
    %624 = vmatprep.subr.bf16.mxu0 0
    %625 = vmatpush1.bf16.msra.mxu0 0
    %626 = vmatprep.subr.bf16.mxu0 0
    %627 = vmatpush1.bf16.msra.mxu0 0
    %628 = vmatprep.subr.bf16.mxu0 0
    %629 = vmatpush1.bf16.msra.mxu0 0
    %630 = vmatprep.subr.bf16.mxu0 0
    %631 = vmatpush1.bf16.msra.mxu0 0
    %632 = vmatprep.subr.bf16.mxu0 0
    %633 = vmatpush1.bf16.msra.mxu0 0
    %634 = vmatprep.subr.bf16.mxu0 0
    %635 = vmatpush1.bf16.msra.mxu0 0
    %636 = vmatprep.subr.bf16.mxu0 0
    %637 = vmatpush1.bf16.msra.mxu0 0
    %638 = vmatprep.subr.bf16.mxu0 0
    %639 = vmatpush1.bf16.msra.mxu0 0
    %640 = vmatprep.subr.bf16.mxu0 0
    %641 = vmatpush1.bf16.msra.mxu0 0
    %642 = vmatprep.subr.bf16.mxu0 0
    %643 = vmatpush1.bf16.msra.mxu0 0
    %644 = vmatprep.subr.bf16.mxu0 0
    %645 = vmatpush1.bf16.msra.mxu0 0
    %646 = vmatprep.mubr.bf16.mxu0 0
    %647 = vmatmul.mubr.bf16.gmra.mrb[0].mxu0 %v612
    %v648 = vpop.f32.mrb[0].mxu0
    %v649 = vadd.f32 0.0, %v648
    %v650 = vpop.f32.mrb[0].mxu0
    %v651 = vpop.f32.mrb[0].mxu0
    %v652 = vpop.f32.mrb[0].mxu0
    %653 = vdwg.mxu0
    %v654 = vld [vmem:[%s12] sm:$0x1]
    %v656 = vlaneseq
    %v657 = vshrl.u32 %v656, 7
    %v658 = vsub.s32 0, %v657
    %v659 = vrot.slane %v654, %v658
    %v661 = vadd.f32 %v649, %v659
    %662 = vst.msk [vmem:[%s13] sm:$0xff] %vm336, %v661
    // Predicated region
    $region58: #{tpu_custom_call.1} parent=1 // pred_check
      _
    $region59: #{tpu_custom_call.1} parent=1 // pred_check_branch
      %664 = sbr.rel (0) target = $region61
    $region60: #{tpu_custom_call.1} parent=1 // pred_region
      _
    $region61: #{tpu_custom_call.1} parent=1 // pred_fallthru
      _
    // Predicated region
    $region62: #{tpu_custom_call.1} parent=1 // pred_check
      _
    $region63: #{tpu_custom_call.1} parent=1 // pred_check_branch
      %666 = sbr.rel (0) target = $region65
    $region64: #{tpu_custom_call.1} parent=1 // pred_region
      _
    $region65: #{tpu_custom_call.1} parent=1 // pred_fallthru
      _
    %667 = vsyncpa [#allocation3], 1

</llo_original>
